<compile_context>
chip_gen: v6e
topology: v6e:2x2x1
jax: 0.10.0
libtpu: 0.0.40
codegen_flags: <defaults>
</compile_context>

<pallas_src>
import math

import jax
import jax.numpy as jnp
from jax import lax
from jax.experimental import pallas as pl
from jax.experimental.pallas import tpu as pltpu


# ---------------------------------------------------------------------------
# Fused kernel: one (batch, q-tile) grid point computes a (tq, d_k_pad) output.
# K/V projections are cached in VMEM scratch on the first q-tile of each batch.
# ---------------------------------------------------------------------------
def _one_head_attention_kernel(q_ref, k_ref, v_ref, mask_ref,
                               wq_ref, bq_ref, wk_ref, bk_ref, wv_ref, bv_ref,
                               o_ref, kproj_ref, vproj_ref):
    i = pl.program_id(1)

    # Project K and V once per batch (grid iterates q-tiles innermost, and the
    # q-tile axis is "arbitrary", so i == 0 marks the start of each batch).
    @pl.when(i == 0)
    def _():
        k_in = k_ref[0]                                   # (S, D) bf16
        v_in = v_ref[0]                                   # (S, D) bf16
        K = jnp.dot(k_in, wk_ref[...],
                    preferred_element_type=jnp.float32) + bk_ref[...]
        V = jnp.dot(v_in, wv_ref[...],
                    preferred_element_type=jnp.float32) + bv_ref[...]
        kproj_ref[...] = K.astype(jnp.bfloat16)           # (S, d_k_pad)
        vproj_ref[...] = V.astype(jnp.bfloat16)           # (S, d_k_pad)

    # Q projection for this q-tile (1/sqrt(d_k) folded into wq/bq on host).
    q_in = q_ref[0]                                       # (tq, D) bf16
    Q = jnp.dot(q_in, wq_ref[...],
                preferred_element_type=jnp.float32) + bq_ref[...]   # (tq, d_k_pad) f32

    # scores (tq, S) = Q @ K^T : contract last dims directly (no transpose).
    scores = lax.dot_general(
        Q.astype(jnp.bfloat16), kproj_ref[...],
        dimension_numbers=(((1,), (1,)), ((), ())),
        preferred_element_type=jnp.float32)

    # Single-op masking (mask is {0,1}; matches x*m - 1e9*(1-m) of the module).
    m = mask_ref[0]                                       # (tq, S) int8
    scores = jnp.where(m != 0, scores, -1.0e9)

    # Numerically stable softmax; f32 stats; EUP approx reciprocal (row sums
    # ~1 to within ~1e-3 relative -- fine for eval / forward pass).
    scores = scores - jnp.max(scores, axis=-1, keepdims=True)
    p = jnp.exp(scores)
    p = p * pl.reciprocal(jnp.sum(p, axis=-1, keepdims=True), approx=True)

    # dropout(eval) == identity
    out = jnp.dot(p.astype(jnp.bfloat16), vproj_ref[...],
                  preferred_element_type=jnp.float32)     # (tq, d_k_pad)
    o_ref[0] = out.astype(o_ref.dtype)


# ---------------------------------------------------------------------------
# Wrapper
# ---------------------------------------------------------------------------
def _pick_q_tile(S):
    """Largest multiple-of-8 divisor of S that is <= 256 (or S itself)."""
    if S <= 256:
        return S
    for t in range(256, 0, -8):
        if S % t == 0:
            return t
    return S  # TODO(synk): pad q rows instead for pathological S


def one_headed_attention(query, key, value, mask, params):
    """query/key/value: (B, S, D) f32; mask: (B, S, S) of {0,1}."""
    B, S, D = query.shape
    d_k = params["wq"].shape[1]
    scale = 1.0 / math.sqrt(d_k)

    # Pad the projection output dim to a multiple of 128 (lane-dense stores);
    # padded weight/bias columns are zero, so scores and outputs are unchanged.
    d_kp = ((d_k + 127) // 128) * 128
    pad = d_kp - d_k

    def prep_w(w, s=1.0):
        w = (w * s).astype(jnp.bfloat16)
        return jnp.pad(w, ((0, 0), (0, pad))) if pad else w

    def prep_b(b, s=1.0):
        b = (b * s).astype(jnp.float32).reshape(1, d_k)
        return jnp.pad(b, ((0, 0), (0, pad))) if pad else b

    wq = prep_w(params["wq"], scale); bq = prep_b(params["bq"], scale)
    wk = prep_w(params["wk"]);        bk = prep_b(params["bk"])
    wv = prep_w(params["wv"]);        bv = prep_b(params["bv"])

    # bf16 activations for the MXU (halves HBM traffic and VMEM residency);
    # int8 mask (quarters the dominant (B,S,S) HBM stream).
    q_bf = query.astype(jnp.bfloat16)
    k_bf = key.astype(jnp.bfloat16)
    v_bf = value.astype(jnp.bfloat16)
    mask_i8 = (mask != 0).astype(jnp.int8)

    tq = _pick_q_tile(S)
    grid = (B, S // tq)

    out = pl.pallas_call(
        _one_head_attention_kernel,
        out_shape=jax.ShapeDtypeStruct((B, S, d_kp), jnp.float32),
        grid_spec=pltpu.PrefetchScalarGridSpec(
            num_scalar_prefetch=0,
            grid=grid,
            in_specs=[
                pl.BlockSpec((1, tq, D), lambda b, i: (b, i, 0)),   # query q-tile
                pl.BlockSpec((1, S, D), lambda b, i: (b, 0, 0)),    # key   (full S, DMA'd once/batch)
                pl.BlockSpec((1, S, D), lambda b, i: (b, 0, 0)),    # value (full S, DMA'd once/batch)
                pl.BlockSpec((1, tq, S), lambda b, i: (b, i, 0)),   # mask rows (int8)
                pl.BlockSpec((D, d_kp), lambda b, i: (0, 0)),       # W_q (grid-invariant)
                pl.BlockSpec((1, d_kp), lambda b, i: (0, 0)),       # b_q
                pl.BlockSpec((D, d_kp), lambda b, i: (0, 0)),       # W_k
                pl.BlockSpec((1, d_kp), lambda b, i: (0, 0)),       # b_k
                pl.BlockSpec((D, d_kp), lambda b, i: (0, 0)),       # W_v
                pl.BlockSpec((1, d_kp), lambda b, i: (0, 0)),       # b_v
            ],
            out_specs=pl.BlockSpec((1, tq, d_kp), lambda b, i: (b, i, 0)),
            scratch_shapes=[
                pltpu.VMEM((S, d_kp), jnp.bfloat16),                # cached K proj
                pltpu.VMEM((S, d_kp), jnp.bfloat16),                # cached V proj
            ],
        ),
        compiler_params=pltpu.CompilerParams(
            # batch sharded across TensorCores; q-tile axis must be sequential
            # ("arbitrary") so the per-batch K/V scratch cache is valid.
            dimension_semantics=("parallel", "arbitrary"),
        ),
    )(q_bf, k_bf, v_bf, mask_i8, wq, bq, wk, bk, wv, bv)

    return out[:, :, :d_k] if pad else out


# ---------------------------------------------------------------------------
# Pure-JAX reference (f32) for a correctness check.
# ---------------------------------------------------------------------------
def one_headed_attention_ref(query, key, value, mask, params, d_k):
    Q = query @ params["wq"] + params["bq"]
    K = key @ params["wk"] + params["bk"]
    V = value @ params["wv"] + params["bv"]
    scores = Q @ jnp.swapaxes(K, 1, 2) / math.sqrt(d_k)
    scores = scores * mask - 1.0e9 * (1.0 - mask)
    p = jax.nn.softmax(scores, axis=-1)
    return p @ V


def init_params(key, n_units, d_k):
    """Uniform(-1/sqrt(n_units), 1/sqrt(n_units)) init like nn.Linear."""
    bound = math.sqrt(1.0 / n_units)
    ks = jax.random.split(key, 6)

    def unif(k, shape):
        return jax.random.uniform(k, shape, jnp.float32, minval=-bound, maxval=bound)

    # nn.Linear(n_units, d_k) weight is (d_k, n_units); stored transposed (D, d_k)
    return {
        "wq": unif(ks[0], (n_units, d_k)),
        "bq": unif(ks[1], (d_k,)),
        "wk": unif(ks[2], (n_units, d_k)),
        "bk": unif(ks[3], (d_k,)),
        "wv": unif(ks[4], (n_units, d_k)),
        "bv": unif(ks[5], (d_k,)),
    }


if __name__ == "__main__":
    B, S, n_units, d_k = 2, 8, 32, 16

    root = jax.random.PRNGKey(0)
    k_p, k_q, k_k, k_v = jax.random.split(root, 4)

    params = init_params(k_p, n_units, d_k)
    query = jax.random.normal(k_q, (B, S, n_units), jnp.float32)
    key_t = jax.random.normal(k_k, (B, S, n_units), jnp.float32)
    value = jax.random.normal(k_v, (B, S, n_units), jnp.float32)

    # causal {0,1} mask, shape (B, S, S)
    causal = jnp.tril(jnp.ones((S, S), jnp.float32))
    mask = jnp.broadcast_to(causal, (B, S, S))

    out = one_headed_attention(query, key_t, value, mask, params)
    jax.block_until_ready(out)

    ref = one_headed_attention_ref(query, key_t, value, mask, params, d_k)

    assert out.shape == (B, S, d_k)
    assert bool(jnp.all(jnp.isfinite(out)))
    # bf16 MXU operands + approx reciprocal -> loose tolerance vs f32 ref.
    assert bool(jnp.allclose(out, ref, atol=5e-2, rtol=5e-2)), \
        float(jnp.max(jnp.abs(out - ref)))
    print("KERNEL_OK")
</pallas_src>

<mosaic_0001>
module attributes {stable_mosaic.version = 11 : i64} {
  func.func @_one_head_attention_kernel(%arg0: i32, %arg1: i32, %arg2: memref<1x8x32xbf16, #tpu.memory_space<vmem>>, %arg3: memref<1x8x32xbf16, #tpu.memory_space<vmem>>, %arg4: memref<1x8x32xbf16, #tpu.memory_space<vmem>>, %arg5: memref<1x8x8xi8, #tpu.memory_space<vmem>>, %arg6: memref<32x128xbf16, #tpu.memory_space<vmem>>, %arg7: memref<1x128xf32, #tpu.memory_space<vmem>>, %arg8: memref<32x128xbf16, #tpu.memory_space<vmem>>, %arg9: memref<1x128xf32, #tpu.memory_space<vmem>>, %arg10: memref<32x128xbf16, #tpu.memory_space<vmem>>, %arg11: memref<1x128xf32, #tpu.memory_space<vmem>>, %arg12: memref<1x8x128xf32, #tpu.memory_space<vmem>>, %arg13: memref<8x128xbf16, #tpu.memory_space<vmem>>, %arg14: memref<8x128xbf16, #tpu.memory_space<vmem>>) attributes {dimension_semantics = [#tpu.dimension_semantics<parallel>, #tpu.dimension_semantics<arbitrary>], iteration_bounds = array<i64: 2, 1>, scalar_prefetch = 0 : i64, scratch_operands = 2 : i64, tpu.core_type = #tpu.core_type<tc>, window_params = [{transform_indices = @transform_0, window_bounds = array<i64: 1, 8, 32>}, {transform_indices = @transform_1, window_bounds = array<i64: 1, 8, 32>}, {transform_indices = @transform_2, window_bounds = array<i64: 1, 8, 32>}, {transform_indices = @transform_3, window_bounds = array<i64: 1, 8, 8>}, {pipeline_mode = #tpu.pipeline_mode<synchronous>, transform_indices = @transform_4, window_bounds = array<i64: 32, 128>}, {pipeline_mode = #tpu.pipeline_mode<synchronous>, transform_indices = @transform_5, window_bounds = array<i64: 1, 128>}, {pipeline_mode = #tpu.pipeline_mode<synchronous>, transform_indices = @transform_6, window_bounds = array<i64: 32, 128>}, {pipeline_mode = #tpu.pipeline_mode<synchronous>, transform_indices = @transform_7, window_bounds = array<i64: 1, 128>}, {pipeline_mode = #tpu.pipeline_mode<synchronous>, transform_indices = @transform_8, window_bounds = array<i64: 32, 128>}, {pipeline_mode = #tpu.pipeline_mode<synchronous>, transform_indices = @transform_9, window_bounds = array<i64: 1, 128>}, {transform_indices = @transform_10, window_bounds = array<i64: 1, 8, 128>}]} {
    %c0_i32 = arith.constant 0 : i32
    %0 = arith.cmpi eq, %arg1, %c0_i32 : i32
    %1 = arith.extui %0 : i1 to i32
    %c0_i32_0 = arith.constant 0 : i32
    %2 = arith.cmpi ne, %1, %c0_i32_0 : i32
    scf.if %2 {
      %c0_22 = arith.constant 0 : index
      %c0_23 = arith.constant 0 : index
      %c0_24 = arith.constant 0 : index
      %35 = vector.load %arg3[%c0_22, %c0_23, %c0_24] : memref<1x8x32xbf16, #tpu.memory_space<vmem>>, vector<1x8x32xbf16>
      %36 = vector.shape_cast %35 : vector<1x8x32xbf16> to vector<8x32xbf16>
      %c0_25 = arith.constant 0 : index
      %c0_26 = arith.constant 0 : index
      %c0_27 = arith.constant 0 : index
      %37 = vector.load %arg4[%c0_25, %c0_26, %c0_27] : memref<1x8x32xbf16, #tpu.memory_space<vmem>>, vector<1x8x32xbf16>
      %38 = vector.shape_cast %37 : vector<1x8x32xbf16> to vector<8x32xbf16>
      %c0_28 = arith.constant 0 : index
      %c0_29 = arith.constant 0 : index
      %39 = vector.load %arg8[%c0_28, %c0_29] : memref<32x128xbf16, #tpu.memory_space<vmem>>, vector<32x128xbf16>
      %cst_30 = arith.constant dense<0.000000e+00> : vector<8x128xf32>
      %40 = tpu.matmul %36, %39, %cst_30 {dimension_numbers = #tpu.dot_dimension_numbers<[1], [0], [0], [1], [0, 0, 1, 1], [], []>} : vector<8x32xbf16>, vector<32x128xbf16>, vector<8x128xf32> -> vector<8x128xf32>
      %c0_31 = arith.constant 0 : index
      %c0_32 = arith.constant 0 : index
      %41 = vector.load %arg9[%c0_31, %c0_32] : memref<1x128xf32, #tpu.memory_space<vmem>>, vector<1x128xf32>
      %42 = vector.broadcast %41 : vector<1x128xf32> to vector<8x128xf32>
      %43 = arith.addf %40, %42 : vector<8x128xf32>
      %c0_33 = arith.constant 0 : index
      %c0_34 = arith.constant 0 : index
      %44 = vector.load %arg10[%c0_33, %c0_34] : memref<32x128xbf16, #tpu.memory_space<vmem>>, vector<32x128xbf16>
      %cst_35 = arith.constant dense<0.000000e+00> : vector<8x128xf32>
      %45 = tpu.matmul %38, %44, %cst_35 {dimension_numbers = #tpu.dot_dimension_numbers<[1], [0], [0], [1], [0, 0, 1, 1], [], []>} : vector<8x32xbf16>, vector<32x128xbf16>, vector<8x128xf32> -> vector<8x128xf32>
      %c0_36 = arith.constant 0 : index
      %c0_37 = arith.constant 0 : index
      %46 = vector.load %arg11[%c0_36, %c0_37] : memref<1x128xf32, #tpu.memory_space<vmem>>, vector<1x128xf32>
      %47 = vector.broadcast %46 : vector<1x128xf32> to vector<8x128xf32>
      %48 = arith.addf %45, %47 : vector<8x128xf32>
      %49 = arith.truncf %43 : vector<8x128xf32> to vector<8x128xbf16>
      %c0_38 = arith.constant 0 : index
      %c0_39 = arith.constant 0 : index
      %50 = vector.load %arg13[%c0_38, %c0_39] : memref<8x128xbf16, #tpu.memory_space<vmem>>, vector<8x128xbf16>
      tpu.vector_store %arg13[%c0_38, %c0_39], %49 {strides = array<i32>} : memref<8x128xbf16, #tpu.memory_space<vmem>>, vector<8x128xbf16>,
      %51 = arith.truncf %48 : vector<8x128xf32> to vector<8x128xbf16>
      %c0_40 = arith.constant 0 : index
      %c0_41 = arith.constant 0 : index
      %52 = vector.load %arg14[%c0_40, %c0_41] : memref<8x128xbf16, #tpu.memory_space<vmem>>, vector<8x128xbf16>
      tpu.vector_store %arg14[%c0_40, %c0_41], %51 {strides = array<i32>} : memref<8x128xbf16, #tpu.memory_space<vmem>>, vector<8x128xbf16>,
    } else {
    }
    %c0 = arith.constant 0 : index
    %c0_1 = arith.constant 0 : index
    %c0_2 = arith.constant 0 : index
    %3 = vector.load %arg2[%c0, %c0_1, %c0_2] : memref<1x8x32xbf16, #tpu.memory_space<vmem>>, vector<1x8x32xbf16>
    %4 = vector.shape_cast %3 : vector<1x8x32xbf16> to vector<8x32xbf16>
    %c0_3 = arith.constant 0 : index
    %c0_4 = arith.constant 0 : index
    %5 = vector.load %arg6[%c0_3, %c0_4] : memref<32x128xbf16, #tpu.memory_space<vmem>>, vector<32x128xbf16>
    %cst = arith.constant dense<0.000000e+00> : vector<8x128xf32>
    %6 = tpu.matmul %4, %5, %cst {dimension_numbers = #tpu.dot_dimension_numbers<[1], [0], [0], [1], [0, 0, 1, 1], [], []>} : vector<8x32xbf16>, vector<32x128xbf16>, vector<8x128xf32> -> vector<8x128xf32>
    %c0_5 = arith.constant 0 : index
    %c0_6 = arith.constant 0 : index
    %7 = vector.load %arg7[%c0_5, %c0_6] : memref<1x128xf32, #tpu.memory_space<vmem>>, vector<1x128xf32>
    %8 = vector.broadcast %7 : vector<1x128xf32> to vector<8x128xf32>
    %9 = arith.addf %6, %8 : vector<8x128xf32>
    %10 = arith.truncf %9 : vector<8x128xf32> to vector<8x128xbf16>
    %c0_7 = arith.constant 0 : index
    %c0_8 = arith.constant 0 : index
    %11 = vector.load %arg13[%c0_7, %c0_8] : memref<8x128xbf16, #tpu.memory_space<vmem>>, vector<8x128xbf16>
    %cst_9 = arith.constant dense<0.000000e+00> : vector<8x8xf32>
    %12 = tpu.matmul %10, %11, %cst_9 {dimension_numbers = #tpu.dot_dimension_numbers<[1], [1], [0], [0], [0, 0, 1, 0], [], []>} : vector<8x128xbf16>, vector<8x128xbf16>, vector<8x8xf32> -> vector<8x8xf32>
    %c0_10 = arith.constant 0 : index
    %c0_11 = arith.constant 0 : index
    %c0_12 = arith.constant 0 : index
    %13 = vector.load %arg5[%c0_10, %c0_11, %c0_12] : memref<1x8x8xi8, #tpu.memory_space<vmem>>, vector<1x8x8xi8>
    %14 = vector.shape_cast %13 : vector<1x8x8xi8> to vector<8x8xi8>
    %c0_i8 = arith.constant 0 : i8
    %15 = vector.broadcast %c0_i8 : i8 to vector<8x8xi8>
    %16 = arith.cmpi ne, %14, %15 : vector<8x8xi8>
    %cst_13 = arith.constant -1.000000e+09 : f32
    %17 = vector.broadcast %cst_13 : f32 to vector<8x8xf32>
    %18 = arith.select %16, %12, %17 : vector<8x8xi1>, vector<8x8xf32>
    %cst_14 = arith.constant dense<0xFF800000> : vector<8xf32>
    %19 = vector.multi_reduction <maximumf>, %18, %cst_14 [1] : vector<8x8xf32> to vector<8xf32>
    %20 = vector.shape_cast %19 : vector<8xf32> to vector<8x1xf32>
    %21 = vector.broadcast %20 : vector<8x1xf32> to vector<8x8xf32>
    %22 = arith.subf %18, %21 : vector<8x8xf32>
    %23 = math.exp %22 : vector<8x8xf32>
    %cst_15 = arith.constant dense<0.000000e+00> : vector<8xf32>
    %24 = vector.multi_reduction <add>, %23, %cst_15 [1] : vector<8x8xf32> to vector<8xf32>
    %25 = vector.shape_cast %24 : vector<8xf32> to vector<8x1xf32>
    %26 = tpu.reciprocal %25 {approx = true} : vector<8x1xf32> -> vector<8x1xf32>
    %27 = vector.broadcast %26 : vector<8x1xf32> to vector<8x8xf32>
    %28 = arith.mulf %23, %27 : vector<8x8xf32>
    %29 = arith.truncf %28 : vector<8x8xf32> to vector<8x8xbf16>
    %c0_16 = arith.constant 0 : index
    %c0_17 = arith.constant 0 : index
    %30 = vector.load %arg14[%c0_16, %c0_17] : memref<8x128xbf16, #tpu.memory_space<vmem>>, vector<8x128xbf16>
    %cst_18 = arith.constant dense<0.000000e+00> : vector<8x128xf32>
    %31 = tpu.matmul %29, %30, %cst_18 {dimension_numbers = #tpu.dot_dimension_numbers<[1], [0], [0], [1], [0, 0, 1, 1], [], []>} : vector<8x8xbf16>, vector<8x128xbf16>, vector<8x128xf32> -> vector<8x128xf32>
    %c0_19 = arith.constant 0 : index
    %c0_20 = arith.constant 0 : index
    %c0_21 = arith.constant 0 : index
    %32 = vector.load %arg12[%c0_19, %c0_20, %c0_21] : memref<1x8x128xf32, #tpu.memory_space<vmem>>, vector<1x8x128xf32>
    %33 = vector.shape_cast %32 : vector<1x8x128xf32> to vector<8x128xf32>
    %34 = vector.shape_cast %31 : vector<8x128xf32> to vector<1x8x128xf32>
    tpu.vector_store %arg12[%c0_19, %c0_20, %c0_21], %34 {strides = array<i32>} : memref<1x8x128xf32, #tpu.memory_space<vmem>>, vector<1x8x128xf32>,
    return
  }
  func.func @transform_0(%arg0: i32, %arg1: i32) -> (i32, i32, i32) {
    %c0_i32 = arith.constant 0 : i32
    %c0_i32_0 = arith.constant 0 : i32
    return %arg0, %arg1, %c0_i32 : i32, i32, i32
  }
  func.func @transform_1(%arg0: i32, %arg1: i32) -> (i32, i32, i32) {
    %c0_i32 = arith.constant 0 : i32
    %c0_i32_0 = arith.constant 0 : i32
    %c0_i32_1 = arith.constant 0 : i32
    return %arg0, %c0_i32, %c0_i32_0 : i32, i32, i32
  }
  func.func @transform_2(%arg0: i32, %arg1: i32) -> (i32, i32, i32) {
    %c0_i32 = arith.constant 0 : i32
    %c0_i32_0 = arith.constant 0 : i32
    %c0_i32_1 = arith.constant 0 : i32
    return %arg0, %c0_i32, %c0_i32_0 : i32, i32, i32
  }
  func.func @transform_3(%arg0: i32, %arg1: i32) -> (i32, i32, i32) {
    %c0_i32 = arith.constant 0 : i32
    %c0_i32_0 = arith.constant 0 : i32
    return %arg0, %arg1, %c0_i32 : i32, i32, i32
  }
  func.func @transform_4(%arg0: i32, %arg1: i32) -> (i32, i32) {
    %c0_i32 = arith.constant 0 : i32
    %c0_i32_0 = arith.constant 0 : i32
    %c0_i32_1 = arith.constant 0 : i32
    return %c0_i32, %c0_i32_0 : i32, i32
  }
  func.func @transform_5(%arg0: i32, %arg1: i32) -> (i32, i32) {
    %c0_i32 = arith.constant 0 : i32
    %c0_i32_0 = arith.constant 0 : i32
    %c0_i32_1 = arith.constant 0 : i32
    return %c0_i32, %c0_i32_0 : i32, i32
  }
  func.func @transform_6(%arg0: i32, %arg1: i32) -> (i32, i32) {
    %c0_i32 = arith.constant 0 : i32
    %c0_i32_0 = arith.constant 0 : i32
    %c0_i32_1 = arith.constant 0 : i32
    return %c0_i32, %c0_i32_0 : i32, i32
  }
  func.func @transform_7(%arg0: i32, %arg1: i32) -> (i32, i32) {
    %c0_i32 = arith.constant 0 : i32
    %c0_i32_0 = arith.constant 0 : i32
    %c0_i32_1 = arith.constant 0 : i32
    return %c0_i32, %c0_i32_0 : i32, i32
  }
  func.func @transform_8(%arg0: i32, %arg1: i32) -> (i32, i32) {
    %c0_i32 = arith.constant 0 : i32
    %c0_i32_0 = arith.constant 0 : i32
    %c0_i32_1 = arith.constant 0 : i32
    return %c0_i32, %c0_i32_0 : i32, i32
  }
  func.func @transform_9(%arg0: i32, %arg1: i32) -> (i32, i32) {
    %c0_i32 = arith.constant 0 : i32
    %c0_i32_0 = arith.constant 0 : i32
    %c0_i32_1 = arith.constant 0 : i32
    return %c0_i32, %c0_i32_0 : i32, i32
  }
  func.func @transform_10(%arg0: i32, %arg1: i32) -> (i32, i32, i32) {
    %c0_i32 = arith.constant 0 : i32
    %c0_i32_0 = arith.constant 0 : i32
    return %arg0, %arg1, %c0_i32 : i32, i32, i32
  }
}

</mosaic_0001>

<llo_original>
// kernel: tpu_custom_call.1
$region0: #{tpu_custom_call.1}
  #allocation0 [shape = 'u32[]', space=smem, size = 0x4, offset = 0x4, fixed_abs, tag = 'smem constant byte address 0x4 - core index']
  #allocation1 [shape = 'u32[144,128]{1,0:T(1,128)}', space=vmem, size = 0x12000, scoped, tag = 'internal scratch']
  #allocation2 [shape = 'bf16[8,128]{1,0:T(8,128)(2,1)}', space=vmem, size = 0x800, scoped, tag = 'scratch operand']
  #allocation3 [shape = 'bf16[8,128]{1,0:T(8,128)(2,1)}', space=vmem, size = 0x800, scoped, tag = 'scratch operand']
  %s0 = inlined_call_operand.hbm [shape: bf16[2,8,32], index: 0, kind: input, shape index: {}]
  %s1 = inlined_call_operand.hbm [shape: bf16[2,8,32], index: 1, kind: input, shape index: {}]
  %s2 = inlined_call_operand.hbm [shape: bf16[2,8,32], index: 2, kind: input, shape index: {}]
  %s3 = inlined_call_operand.vmem [shape: s8[2,8,8], index: 3, kind: input, shape index: {}]
  %s4 = inlined_call_operand.hbm [shape: bf16[32,128], index: 4, kind: input, shape index: {}]
  %s5 = inlined_call_operand.vmem [shape: f32[1,128], index: 5, kind: input, shape index: {}]
  %s6 = inlined_call_operand.hbm [shape: bf16[32,128], index: 6, kind: input, shape index: {}]
  %s7 = inlined_call_operand.vmem [shape: f32[1,128], index: 7, kind: input, shape index: {}]
  %s8 = inlined_call_operand.hbm [shape: bf16[32,128], index: 8, kind: input, shape index: {}]
  %s9 = inlined_call_operand.vmem [shape: f32[1,128], index: 9, kind: input, shape index: {}]
  %s10 = inlined_call_operand.hbm [shape: f32[2,8,128], index: 10, kind: output, shape index: {}]
  %s11 = sld [smem:[#allocation0]]
  $region101: #{tpu_custom_call.1} parent=0
    _
  %s13 = ssub.s32 1, %s11
  %s14 = scalar_select 0, %s13, %s11
  $region1: #{tpu_custom_call.1} parent=0
    #allocation4 [shape = 'u8[4096]{0}', space=vmem, size = 0x1000, scoped, tag = 'input window, operand 0']
    #allocation5 [shape = 's32[2]{0}', space=sflag, size = 0x8, scoped, tag = 'scoped memory for tpu_custom_call.1']
    #allocation6 [shape = 's32[2]{0}', space=sflag, size = 0x8, scoped, tag = 'scoped memory for tpu_custom_call.1']
    #allocation7 [shape = 'u8[4096]{0}', space=vmem, size = 0x1000, scoped, tag = 'input window, operand 1']
    #allocation8 [shape = 's32[2]{0}', space=sflag, size = 0x8, scoped, tag = 'scoped memory for tpu_custom_call.1']
    #allocation9 [shape = 'u8[4096]{0}', space=vmem, size = 0x1000, scoped, tag = 'input window, operand 2']
    #allocation10 [shape = 'u8[8192]{0}', space=vmem, size = 0x2000, scoped, tag = 'input window, operand 4, single buffered']
    #allocation11 [shape = 's32[1]{0}', space=sflag, size = 0x4, scoped, tag = 'scoped memory for tpu_custom_call.1']
    #allocation12 [shape = 'u8[8192]{0}', space=vmem, size = 0x2000, scoped, tag = 'input window, operand 6, single buffered']
    #allocation13 [shape = 'u8[8192]{0}', space=vmem, size = 0x2000, scoped, tag = 'input window, operand 8, single buffered']
    #allocation14 [shape = 's32[1]{0}', space=sflag, size = 0x4, scoped, tag = 'scoped memory for tpu_custom_call.1']
    #allocation15 [shape = 'u8[8192]{0}', space=vmem, size = 0x2000, scoped, tag = 'output window, operand 0']
    %15 = vsyncpa [#allocation5], 0
    %s16 = scalar_lea.sflag [#allocation5], 1
    %17 = vsyncpa %s16, 0
    %18 = vsyncpa [#allocation8], 0
    %s19 = scalar_lea.sflag [#allocation8], 1
    %20 = vsyncpa %s19, 0
    %21 = vsyncpa [#allocation11], 0
    %22 = vsyncpa [#allocation14], 0
    %23 = vsyncpa [#allocation6], 0
    %s24 = scalar_lea.sflag [#allocation6], 1
    %25 = vsyncpa %s24, 0
    loop: start=0, step=1, limit=4
    $region2: #{tpu_custom_call.1} parent=1 // loop_pre_header
      _
    $region3: #{tpu_custom_call.1} parent=1 // loop_header
      %s27 = sphi 0, %s31
      %p28 = scmp.ge.s32.totalorder %s27, 4
      %s34 = sphi 0, %s46
      %s35 = sphi 0, %s42
      %s36 = sphi 0, %s34
      %s37 = sphi 0, %s35
      %s38 = sphi 0, %s36
      %s39 = sphi 0, %s37
      %s51 = sphi 0, %s53
      %s54 = sphi 0, %s51
      %s55 = sphi 0, %s54
      %s71 = sphi 0, %s55
      %s77 = sphi 0, %s79
      %s80 = sphi 0, %s77
      %s81 = sphi 0, %s80
      %s97 = sphi 0, %s81
      %s103 = sphi 0, %s105
      %s106 = sphi 0, %s103
      %s107 = sphi 0, %s106
      %s123 = sphi 0, %s107
      %s131 = sphi 0, %s133
      %s134 = sphi 0, %s131
      %s135 = sphi 0, %s134
      %s151 = sphi 0, %s135
      %s155 = sphi 0, %s155
      %s157 = sphi 0, %s155
      %s158 = sphi 0, %s157
      %s172 = sphi 0, %s158
      %s176 = sphi 0, %s176
      %s178 = sphi 0, %s176
      %s179 = sphi 0, %s178
      %s193 = sphi 0, %s179
      %s197 = sphi 0, %s197
      %s199 = sphi 0, %s197
      %s200 = sphi 0, %s199
      %s214 = sphi 0, %s200
      %s218 = sphi 0, %s218
      %s220 = sphi 0, %s218
      %s221 = sphi 0, %s220
      %s235 = sphi 0, %s221
      %s239 = sphi 0, %s239
      %s241 = sphi 0, %s239
      %s242 = sphi 0, %s241
      %s256 = sphi 0, %s242
      %s260 = sphi 0, %s260
      %s262 = sphi 0, %s260
      %s263 = sphi 0, %s262
      %s277 = sphi 0, %s263
      %s285 = sphi 0, %s287
      %s288 = sphi 0, %s285
      %s289 = sphi 0, %s288
      %s305 = sphi 0, %s289
    $region4: #{tpu_custom_call.1} parent=1 // loop_header_branch
      %30 = sbr.rel (%p28) target = $region8
    $region5: #{tpu_custom_call.1} parent=1 // loop_body
      %s32 = ssub.s32 %s27, 1
      %s33 = ssub.s32 %s27, 2
      %s40 = sadd.s32 1, %s35
      %p41 = scmp.ge.s32.totalorder %s40, 1
      %s42 = scalar_select %p41, 0, %s40
      %s43 = sadd.s32 1, %s34
      %s44 = scalar_select %p41, %s43, %s34
      %p45 = scmp.ge.s32.totalorder %s44, 2
      %s46 = scalar_select %p45, 0, %s44
      %s47 = ssub.s32 %s34, %s46
      %s48 = ssub.s32 %s35, %s42
      %s49 = sor.u32 %s47, %s48
      %p50 = scmp.eq.s32.totalorder %s49, 0
      %s52 = sadd.s32 %s51, 1
      %s53 = scalar_select %p50, %s51, %s52
      %p56 = pneg %p50
      %p57 = scmp.eq.s32.totalorder %s27, 1
      %p58 = por %p56, %p57
      %p59 = scmp.ne.s32.totalorder %s51, %s54
      %p60 = scmp.eq.s32.totalorder %s27, 0
      %p61 = por %p59, %p60
      %p62 = scmp.ne.s32.totalorder %s51, %s54
      %p63 = scmp.eq.s32.totalorder %s32, 1
      %p64 = por %p62, %p63
      %p65 = scmp.ne.s32.totalorder %s54, %s55
      %p66 = scmp.eq.s32.totalorder %s32, 0
      %p67 = por %p65, %p66
      %p68 = scmp.ne.s32.totalorder %s54, %s55
      %p69 = scmp.eq.s32.totalorder %s33, 1
      %p70 = por %p68, %p69
      %p72 = scmp.ne.s32.totalorder %s55, %s71
      %p73 = scmp.eq.s32.totalorder %s33, 0
      %p74 = por %p72, %p73
      %s75 = ssub.s32 %s34, %s46
      %p76 = scmp.eq.s32.totalorder %s75, 0
      %s78 = sadd.s32 %s77, 1
      %s79 = scalar_select %p76, %s77, %s78
      %p82 = pneg %p76
      %p83 = scmp.eq.s32.totalorder %s27, 1
      %p84 = por %p82, %p83
      %p85 = scmp.ne.s32.totalorder %s77, %s80
      %p86 = scmp.eq.s32.totalorder %s27, 0
      %p87 = por %p85, %p86
      %p88 = scmp.ne.s32.totalorder %s77, %s80
      %p89 = scmp.eq.s32.totalorder %s32, 1
      %p90 = por %p88, %p89
      %p91 = scmp.ne.s32.totalorder %s80, %s81
      %p92 = scmp.eq.s32.totalorder %s32, 0
      %p93 = por %p91, %p92
      %p94 = scmp.ne.s32.totalorder %s80, %s81
      %p95 = scmp.eq.s32.totalorder %s33, 1
      %p96 = por %p94, %p95
      %p98 = scmp.ne.s32.totalorder %s81, %s97
      %p99 = scmp.eq.s32.totalorder %s33, 0
      %p100 = por %p98, %p99
      %s101 = ssub.s32 %s34, %s46
      %p102 = scmp.eq.s32.totalorder %s101, 0
      %s104 = sadd.s32 %s103, 1
      %s105 = scalar_select %p102, %s103, %s104
      %p108 = pneg %p102
      %p109 = scmp.eq.s32.totalorder %s27, 1
      %p110 = por %p108, %p109
      %p111 = scmp.ne.s32.totalorder %s103, %s106
      %p112 = scmp.eq.s32.totalorder %s27, 0
      %p113 = por %p111, %p112
      %p114 = scmp.ne.s32.totalorder %s103, %s106
      %p115 = scmp.eq.s32.totalorder %s32, 1
      %p116 = por %p114, %p115
      %p117 = scmp.ne.s32.totalorder %s106, %s107
      %p118 = scmp.eq.s32.totalorder %s32, 0
      %p119 = por %p117, %p118
      %p120 = scmp.ne.s32.totalorder %s106, %s107
      %p121 = scmp.eq.s32.totalorder %s33, 1
      %p122 = por %p120, %p121
      %p124 = scmp.ne.s32.totalorder %s107, %s123
      %p125 = scmp.eq.s32.totalorder %s33, 0
      %p126 = por %p124, %p125
      %s127 = ssub.s32 %s34, %s46
      %s128 = ssub.s32 %s35, %s42
      %s129 = sor.u32 %s127, %s128
      %p130 = scmp.eq.s32.totalorder %s129, 0
      %s132 = sadd.s32 %s131, 1
      %s133 = scalar_select %p130, %s131, %s132
      %p136 = pneg %p130
      %p137 = scmp.eq.s32.totalorder %s27, 1
      %p138 = por %p136, %p137
      %p139 = scmp.ne.s32.totalorder %s131, %s134
      %p140 = scmp.eq.s32.totalorder %s27, 0
      %p141 = por %p139, %p140
      %p142 = scmp.ne.s32.totalorder %s131, %s134
      %p143 = scmp.eq.s32.totalorder %s32, 1
      %p144 = por %p142, %p143
      %p145 = scmp.ne.s32.totalorder %s134, %s135
      %p146 = scmp.eq.s32.totalorder %s32, 0
      %p147 = por %p145, %p146
      %p148 = scmp.ne.s32.totalorder %s134, %s135
      %p149 = scmp.eq.s32.totalorder %s33, 1
      %p150 = por %p148, %p149
      %p152 = scmp.ne.s32.totalorder %s135, %s151
      %p153 = scmp.eq.s32.totalorder %s33, 0
      %p154 = por %p152, %p153
      %s156 = sadd.s32 %s155, 1
      %p159 = scmp.eq.s32.totalorder %s27, 1
      %p160 = scmp.ne.s32.totalorder %s155, %s157
      %p161 = scmp.eq.s32.totalorder %s27, 0
      %p162 = por %p160, %p161
      %p163 = scmp.ne.s32.totalorder %s155, %s157
      %p164 = scmp.eq.s32.totalorder %s32, 1
      %p165 = por %p163, %p164
      %p166 = scmp.ne.s32.totalorder %s157, %s158
      %p167 = scmp.eq.s32.totalorder %s32, 0
      %p168 = por %p166, %p167
      %p169 = scmp.ne.s32.totalorder %s157, %s158
      %p170 = scmp.eq.s32.totalorder %s33, 1
      %p171 = por %p169, %p170
      %p173 = scmp.ne.s32.totalorder %s158, %s172
      %p174 = scmp.eq.s32.totalorder %s33, 0
      %p175 = por %p173, %p174
      %s177 = sadd.s32 %s176, 1
      %p180 = scmp.eq.s32.totalorder %s27, 1
      %p181 = scmp.ne.s32.totalorder %s176, %s178
      %p182 = scmp.eq.s32.totalorder %s27, 0
      %p183 = por %p181, %p182
      %p184 = scmp.ne.s32.totalorder %s176, %s178
      %p185 = scmp.eq.s32.totalorder %s32, 1
      %p186 = por %p184, %p185
      %p187 = scmp.ne.s32.totalorder %s178, %s179
      %p188 = scmp.eq.s32.totalorder %s32, 0
      %p189 = por %p187, %p188
      %p190 = scmp.ne.s32.totalorder %s178, %s179
      %p191 = scmp.eq.s32.totalorder %s33, 1
      %p192 = por %p190, %p191
      %p194 = scmp.ne.s32.totalorder %s179, %s193
      %p195 = scmp.eq.s32.totalorder %s33, 0
      %p196 = por %p194, %p195
      %s198 = sadd.s32 %s197, 1
      %p201 = scmp.eq.s32.totalorder %s27, 1
      %p202 = scmp.ne.s32.totalorder %s197, %s199
      %p203 = scmp.eq.s32.totalorder %s27, 0
      %p204 = por %p202, %p203
      %p205 = scmp.ne.s32.totalorder %s197, %s199
      %p206 = scmp.eq.s32.totalorder %s32, 1
      %p207 = por %p205, %p206
      %p208 = scmp.ne.s32.totalorder %s199, %s200
      %p209 = scmp.eq.s32.totalorder %s32, 0
      %p210 = por %p208, %p209
      %p211 = scmp.ne.s32.totalorder %s199, %s200
      %p212 = scmp.eq.s32.totalorder %s33, 1
      %p213 = por %p211, %p212
      %p215 = scmp.ne.s32.totalorder %s200, %s214
      %p216 = scmp.eq.s32.totalorder %s33, 0
      %p217 = por %p215, %p216
      %s219 = sadd.s32 %s218, 1
      %p222 = scmp.eq.s32.totalorder %s27, 1
      %p223 = scmp.ne.s32.totalorder %s218, %s220
      %p224 = scmp.eq.s32.totalorder %s27, 0
      %p225 = por %p223, %p224
      %p226 = scmp.ne.s32.totalorder %s218, %s220
      %p227 = scmp.eq.s32.totalorder %s32, 1
      %p228 = por %p226, %p227
      %p229 = scmp.ne.s32.totalorder %s220, %s221
      %p230 = scmp.eq.s32.totalorder %s32, 0
      %p231 = por %p229, %p230
      %p232 = scmp.ne.s32.totalorder %s220, %s221
      %p233 = scmp.eq.s32.totalorder %s33, 1
      %p234 = por %p232, %p233
      %p236 = scmp.ne.s32.totalorder %s221, %s235
      %p237 = scmp.eq.s32.totalorder %s33, 0
      %p238 = por %p236, %p237
      %s240 = sadd.s32 %s239, 1
      %p243 = scmp.eq.s32.totalorder %s27, 1
      %p244 = scmp.ne.s32.totalorder %s239, %s241
      %p245 = scmp.eq.s32.totalorder %s27, 0
      %p246 = por %p244, %p245
      %p247 = scmp.ne.s32.totalorder %s239, %s241
      %p248 = scmp.eq.s32.totalorder %s32, 1
      %p249 = por %p247, %p248
      %p250 = scmp.ne.s32.totalorder %s241, %s242
      %p251 = scmp.eq.s32.totalorder %s32, 0
      %p252 = por %p250, %p251
      %p253 = scmp.ne.s32.totalorder %s241, %s242
      %p254 = scmp.eq.s32.totalorder %s33, 1
      %p255 = por %p253, %p254
      %p257 = scmp.ne.s32.totalorder %s242, %s256
      %p258 = scmp.eq.s32.totalorder %s33, 0
      %p259 = por %p257, %p258
      %s261 = sadd.s32 %s260, 1
      %p264 = scmp.eq.s32.totalorder %s27, 1
      %p265 = scmp.ne.s32.totalorder %s260, %s262
      %p266 = scmp.eq.s32.totalorder %s27, 0
      %p267 = por %p265, %p266
      %p268 = scmp.ne.s32.totalorder %s260, %s262
      %p269 = scmp.eq.s32.totalorder %s32, 1
      %p270 = por %p268, %p269
      %p271 = scmp.ne.s32.totalorder %s262, %s263
      %p272 = scmp.eq.s32.totalorder %s32, 0
      %p273 = por %p271, %p272
      %p274 = scmp.ne.s32.totalorder %s262, %s263
      %p275 = scmp.eq.s32.totalorder %s33, 1
      %p276 = por %p274, %p275
      %p278 = scmp.ne.s32.totalorder %s263, %s277
      %p279 = scmp.eq.s32.totalorder %s33, 0
      %p280 = por %p278, %p279
      %s281 = ssub.s32 %s34, %s46
      %s282 = ssub.s32 %s35, %s42
      %s283 = sor.u32 %s281, %s282
      %p284 = scmp.eq.s32.totalorder %s283, 0
      %s286 = sadd.s32 %s285, 1
      %s287 = scalar_select %p284, %s285, %s286
      %p290 = pneg %p284
      %p291 = scmp.eq.s32.totalorder %s27, 1
      %p292 = por %p290, %p291
      %p293 = scmp.ne.s32.totalorder %s285, %s288
      %p294 = scmp.eq.s32.totalorder %s27, 0
      %p295 = por %p293, %p294
      %p296 = scmp.ne.s32.totalorder %s285, %s288
      %p297 = scmp.eq.s32.totalorder %s32, 1
      %p298 = por %p296, %p297
      %p299 = scmp.ne.s32.totalorder %s288, %s289
      %p300 = scmp.eq.s32.totalorder %s32, 0
      %p301 = por %p299, %p300
      %p302 = scmp.ne.s32.totalorder %s288, %s289
      %p303 = scmp.eq.s32.totalorder %s33, 1
      %p304 = por %p302, %p303
      %p306 = scmp.ne.s32.totalorder %s289, %s305
      %p307 = scmp.eq.s32.totalorder %s33, 0
      %p308 = por %p306, %p307
      %p309 = scmp.le.s32.totalorder 1, %s27
      %p310 = scmp.lt.s32.totalorder %s27, 3
      %p311 = pnand %p309, %p310
      %p312 = pneg %p311
      // Predicated region
      $region9: #{tpu_custom_call.1} parent=5 // pred_check
        _
      $region10: #{tpu_custom_call.1} parent=5 // pred_check_branch
        %314 = sbr.rel (%p311) target = $region12
      $region11: #{tpu_custom_call.1} parent=5 // pred_region
        %s315 = ssub.s32 %s27, 1
        // Predicated region
        $region13: #{tpu_custom_call.1} parent=11 // pred_check
          %p316 = pneg %p168
        $region14: #{tpu_custom_call.1} parent=11 // pred_check_branch
          %318 = sbr.rel (%p316) target = $region16
        $region15: #{tpu_custom_call.1} parent=11 // pred_region
          %s320 = ssub.s32 256, 256
          %321 = vsyncadd [#allocation11], %s320
          %s322 = sshll.u32 [#allocation10], 4
          %s323 = int_to_ptr.vmem [resolvable:$true] %s322
          %328 = dma.hbm_to_vmem [thread:$0]  %s4, 256, %s323, [#allocation11], 64, 64, 4
        $region16: #{tpu_custom_call.1} parent=11 // pred_fallthru
          _
        // Predicated region
        $region17: #{tpu_custom_call.1} parent=11 // pred_check
          %p329 = pneg %p189
        $region18: #{tpu_custom_call.1} parent=11 // pred_check_branch
          %331 = sbr.rel (%p329) target = $region20
        $region19: #{tpu_custom_call.1} parent=11 // pred_region
          _
        $region20: #{tpu_custom_call.1} parent=11 // pred_fallthru
          _
        // Predicated region
        $region21: #{tpu_custom_call.1} parent=11 // pred_check
          %p332 = pneg %p210
        $region22: #{tpu_custom_call.1} parent=11 // pred_check_branch
          %334 = sbr.rel (%p332) target = $region24
        $region23: #{tpu_custom_call.1} parent=11 // pred_region
          %s336 = ssub.s32 256, 256
          %337 = vsyncadd [#allocation11], %s336
          %s338 = sshll.u32 [#allocation12], 4
          %s339 = int_to_ptr.vmem [resolvable:$true] %s338
          %344 = dma.hbm_to_vmem [thread:$0]  %s6, 256, %s339, [#allocation11], 64, 64, 4
        $region24: #{tpu_custom_call.1} parent=11 // pred_fallthru
          _
        // Predicated region
        $region25: #{tpu_custom_call.1} parent=11 // pred_check
          %p345 = pneg %p231
        $region26: #{tpu_custom_call.1} parent=11 // pred_check_branch
          %347 = sbr.rel (%p345) target = $region28
        $region27: #{tpu_custom_call.1} parent=11 // pred_region
          _
        $region28: #{tpu_custom_call.1} parent=11 // pred_fallthru
          _
        // Predicated region
        $region29: #{tpu_custom_call.1} parent=11 // pred_check
          %p348 = pneg %p252
        $region30: #{tpu_custom_call.1} parent=11 // pred_check_branch
          %350 = sbr.rel (%p348) target = $region32
        $region31: #{tpu_custom_call.1} parent=11 // pred_region
          %s352 = ssub.s32 256, 256
          %353 = vsyncadd [#allocation14], %s352
          %s354 = sshll.u32 [#allocation13], 4
          %s355 = int_to_ptr.vmem [resolvable:$true] %s354
          %360 = dma.hbm_to_vmem [thread:$0]  %s8, 256, %s355, [#allocation14], 64, 64, 4
        $region32: #{tpu_custom_call.1} parent=11 // pred_fallthru
          _
        // Predicated region
        $region33: #{tpu_custom_call.1} parent=11 // pred_check
          %p361 = pneg %p273
        $region34: #{tpu_custom_call.1} parent=11 // pred_check_branch
          %363 = sbr.rel (%p361) target = $region36
        $region35: #{tpu_custom_call.1} parent=11 // pred_region
          _
        $region36: #{tpu_custom_call.1} parent=11 // pred_fallthru
          _
      $region12: #{tpu_custom_call.1} parent=5 // pred_fallthru
        _
      %p364 = scmp.lt.s32.totalorder %s27, 2
      // Predicated region
      $region37: #{tpu_custom_call.1} parent=5 // pred_check
        %p365 = pneg %p364
      $region38: #{tpu_custom_call.1} parent=5 // pred_check_branch
        %367 = sbr.rel (%p365) target = $region40
      $region39: #{tpu_custom_call.1} parent=5 // pred_region
        // Predicated region
        $region41: #{tpu_custom_call.1} parent=39 // pred_check
          %p368 = pneg %p61
        $region42: #{tpu_custom_call.1} parent=39 // pred_check_branch
          %370 = sbr.rel (%p368) target = $region44
        $region43: #{tpu_custom_call.1} parent=39 // pred_region
          %s371 = sand.u32 %s51, 1
          %s372 = scalar_lea.sflag [#allocation5], %s371
          %s373 = sand.u32 %s51, 1
          %s374 = smul.addr %s373, 4
          %s375 = scalar_lea.vmem [#allocation4], %s374
          %s377 = ssub.s32 64, 64
          %378 = vsyncadd %s372, %s377
          %s379 = sadd.s32 %s35, %s34
          %s380 = smul.addr %s379, 64
          %s381 = scalar_lea.hbm %s0, %s380
          %s383 = sshll.u32 %s375, 4
          %s384 = int_to_ptr.vmem [resolvable:$true] %s383
          %386 = dma.hbm_to_vmem [thread:$0]  %s381, 64, %s384, %s372
        $region44: #{tpu_custom_call.1} parent=39 // pred_fallthru
          _
        // Predicated region
        $region45: #{tpu_custom_call.1} parent=39 // pred_check
          %p387 = pneg %p87
        $region46: #{tpu_custom_call.1} parent=39 // pred_check_branch
          %389 = sbr.rel (%p387) target = $region48
        $region47: #{tpu_custom_call.1} parent=39 // pred_region
          %s390 = sand.u32 %s27, 1
          %s391 = scalar_lea.sflag [#allocation8], %s390
          %s392 = sand.u32 %s77, 1
          %s393 = smul.addr %s392, 4
          %s394 = scalar_lea.vmem [#allocation7], %s393
          %s396 = ssub.s32 64, 64
          %397 = vsyncadd %s391, %s396
          %s398 = smul.addr %s34, 64
          %s399 = scalar_lea.hbm %s1, %s398
          %s401 = sshll.u32 %s394, 4
          %s402 = int_to_ptr.vmem [resolvable:$true] %s401
          %404 = dma.hbm_to_vmem [thread:$0]  %s399, 64, %s402, %s391
        $region48: #{tpu_custom_call.1} parent=39 // pred_fallthru
          _
        // Predicated region
        $region49: #{tpu_custom_call.1} parent=39 // pred_check
          %p405 = pneg %p113
        $region50: #{tpu_custom_call.1} parent=39 // pred_check_branch
          %407 = sbr.rel (%p405) target = $region52
        $region51: #{tpu_custom_call.1} parent=39 // pred_region
          %s408 = sand.u32 %s27, 1
          %s409 = scalar_lea.sflag [#allocation8], %s408
          %s410 = sand.u32 %s103, 1
          %s411 = smul.addr %s410, 4
          %s412 = scalar_lea.vmem [#allocation9], %s411
          %s414 = ssub.s32 64, 64
          %415 = vsyncadd %s409, %s414
          %s416 = smul.addr %s34, 64
          %s417 = scalar_lea.hbm %s2, %s416
          %s419 = sshll.u32 %s412, 4
          %s420 = int_to_ptr.vmem [resolvable:$true] %s419
          %422 = dma.hbm_to_vmem [thread:$0]  %s417, 64, %s420, %s409
        $region52: #{tpu_custom_call.1} parent=39 // pred_fallthru
          _
        // Predicated region
        $region53: #{tpu_custom_call.1} parent=39 // pred_check
          %p423 = pneg %p141
        $region54: #{tpu_custom_call.1} parent=39 // pred_check_branch
          %425 = sbr.rel (%p423) target = $region56
        $region55: #{tpu_custom_call.1} parent=39 // pred_region
          %p426 = scmp.lt.s32.totalorder %s34, 1
          %s427 = scalar_select %p426, %s34, 1
          %p428 = scmp.lt.s32.totalorder %s35, 0
          %s429 = scalar_select %p428, %s35, 0
          %s430 = sadd.s32 %s429, %s427
          %s431 = smul.addr %s430, 2
          %s432 = scalar_lea.vmem %s3, %s431
        $region56: #{tpu_custom_call.1} parent=39 // pred_fallthru
          _
      $region40: #{tpu_custom_call.1} parent=5 // pred_fallthru
        _
      %p433 = scmp.le.s32.totalorder 1, %s27
      %p434 = scmp.lt.s32.totalorder %s27, 3
      %p435 = pnand %p433, %p434
      %p436 = pneg %p435
      // Predicated region
      $region57: #{tpu_custom_call.1} parent=5 // pred_check
        _
      $region58: #{tpu_custom_call.1} parent=5 // pred_check_branch
        %438 = sbr.rel (%p435) target = $region60
      $region59: #{tpu_custom_call.1} parent=5 // pred_region
        %s439 = ssub.s32 %s27, 1
        %s440 = sand.u32 %s54, 1
        %s441 = scalar_lea.sflag [#allocation5], %s440
        %s442 = sand.u32 %s54, 1
        %s443 = smul.addr %s442, 4
        %s444 = scalar_lea.vmem [#allocation4], %s443
        // Predicated region
        $region61: #{tpu_custom_call.1} parent=59 // pred_check
          %p445 = pneg %p67
        $region62: #{tpu_custom_call.1} parent=59 // pred_check_branch
          %447 = sbr.rel (%p445) target = $region64
        $region63: #{tpu_custom_call.1} parent=59 // pred_region
          %448 = dma.done %s441, 64
        $region64: #{tpu_custom_call.1} parent=59 // pred_fallthru
          _
        %s449 = sand.u32 %s32, 1
        %s450 = scalar_lea.sflag [#allocation8], %s449
        %s451 = sand.u32 %s80, 1
        %s452 = smul.addr %s451, 4
        %s453 = scalar_lea.vmem [#allocation7], %s452
        // Predicated region
        $region65: #{tpu_custom_call.1} parent=59 // pred_check
          %p454 = pneg %p93
        $region66: #{tpu_custom_call.1} parent=59 // pred_check_branch
          %456 = sbr.rel (%p454) target = $region68
        $region67: #{tpu_custom_call.1} parent=59 // pred_region
          %457 = dma.done %s450, 64
        $region68: #{tpu_custom_call.1} parent=59 // pred_fallthru
          _
        %s458 = sand.u32 %s32, 1
        %s459 = scalar_lea.sflag [#allocation8], %s458
        %s460 = sand.u32 %s106, 1
        %s461 = smul.addr %s460, 4
        %s462 = scalar_lea.vmem [#allocation9], %s461
        // Predicated region
        $region69: #{tpu_custom_call.1} parent=59 // pred_check
          %p463 = pneg %p119
        $region70: #{tpu_custom_call.1} parent=59 // pred_check_branch
          %465 = sbr.rel (%p463) target = $region72
        $region71: #{tpu_custom_call.1} parent=59 // pred_region
          %466 = dma.done %s459, 64
        $region72: #{tpu_custom_call.1} parent=59 // pred_fallthru
          _
        // Predicated region
        $region73: #{tpu_custom_call.1} parent=59 // pred_check
          %p467 = pneg %p168
        $region74: #{tpu_custom_call.1} parent=59 // pred_check_branch
          %469 = sbr.rel (%p467) target = $region76
        $region75: #{tpu_custom_call.1} parent=59 // pred_region
          %470 = dma.done [#allocation11], 256
        $region76: #{tpu_custom_call.1} parent=59 // pred_fallthru
          _
        // Predicated region
        $region77: #{tpu_custom_call.1} parent=59 // pred_check
          %p471 = pneg %p210
        $region78: #{tpu_custom_call.1} parent=59 // pred_check_branch
          %473 = sbr.rel (%p471) target = $region80
        $region79: #{tpu_custom_call.1} parent=59 // pred_region
          %474 = dma.done [#allocation11], 256
        $region80: #{tpu_custom_call.1} parent=59 // pred_fallthru
          _
        // Predicated region
        $region81: #{tpu_custom_call.1} parent=59 // pred_check
          %p475 = pneg %p252
        $region82: #{tpu_custom_call.1} parent=59 // pred_check_branch
          %477 = sbr.rel (%p475) target = $region84
        $region83: #{tpu_custom_call.1} parent=59 // pred_region
          %478 = dma.done [#allocation14], 256
        $region84: #{tpu_custom_call.1} parent=59 // pred_fallthru
          _
        %s479 = sand.u32 %s54, 1
        %s480 = scalar_lea.sflag [#allocation5], %s479
        %s481 = sand.u32 %s54, 1
        %s482 = smul.addr %s481, 4
        %s483 = scalar_lea.vmem [#allocation4], %s482
        %p484 = pneg %p67
        %p485 = pneg %p64
        %s486 = sand.u32 %s32, 1
        %s487 = scalar_lea.sflag [#allocation8], %s486
        %s488 = sand.u32 %s80, 1
        %s489 = smul.addr %s488, 4
        %s490 = scalar_lea.vmem [#allocation7], %s489
        %p491 = pneg %p93
        %p492 = pneg %p90
        %s493 = sand.u32 %s32, 1
        %s494 = scalar_lea.sflag [#allocation8], %s493
        %s495 = sand.u32 %s106, 1
        %s496 = smul.addr %s495, 4
        %s497 = scalar_lea.vmem [#allocation9], %s496
        %p498 = pneg %p119
        %p499 = pneg %p116
        %p500 = scmp.lt.s32.totalorder %s36, 1
        %s501 = scalar_select %p500, %s36, 1
        %p502 = scmp.lt.s32.totalorder %s37, 0
        %s503 = scalar_select %p502, %s37, 0
        %s504 = sadd.s32 %s503, %s501
        %s505 = smul.addr %s504, 2
        %s506 = scalar_lea.vmem %s3, %s505
        %p507 = pneg %p147
        %p508 = pneg %p144
        %p509 = pneg %p168
        %p510 = pneg %p165
        %p511 = pneg %p189
        %p512 = pneg %p186
        %p513 = pneg %p210
        %p514 = pneg %p207
        %p515 = pneg %p231
        %p516 = pneg %p228
        %p517 = pneg %p252
        %p518 = pneg %p249
        %p519 = pneg %p273
        %p520 = pneg %p270
        %p521 = pneg %p301
        %p522 = pneg %p298
        %s523 = sand.u32 %s288, 1
        %s524 = scalar_lea.sflag [#allocation6], %s523
        %s525 = sand.u32 %s288, 1
        %s526 = smul.addr %s525, 8
        %s527 = scalar_lea.vmem [#allocation15], %s526
        %p528 = scmp.lt.s32.totalorder %s36, 1
        %s529 = scalar_select %p528, %s36, 1
        %p530 = scmp.lt.s32.totalorder %s37, 0
        %s531 = scalar_select %p530, %s37, 0
        %s532 = sadd.s32 %s531, %s529
        %s533 = smul.addr %s532, 2
        %s534 = scalar_lea.vmem %s3, %s533
        %p538 = scmp.eq.s32.totalorder %s37, 0
        // Predicated region
        $region85: #{tpu_custom_call.1} parent=59 // pred_check
          %p539 = pneg %p538
        $region86: #{tpu_custom_call.1} parent=59 // pred_check_branch
          %541 = sbr.rel (%p539) target = $region88
        $region87: #{tpu_custom_call.1} parent=59 // pred_region
          %v542 = vld [vmem:[%s453] sm:$0xf]
          %v543 = vld [vmem:[%s462] sm:$0xf]
          %v544 = vld [vmem:[#allocation12] sm:$0xf]
          %v545 = vld [vmem:[#allocation12 + $0x4] sm:$0xf]
          %v546 = vld [vmem:[#allocation12 + $0x8] sm:$0xf]
          %v547 = vld [vmem:[#allocation12 + $0xc] sm:$0xf]
          %v548 = vld [vmem:[%s7] sm:$0x1]
          %v550 = vlaneseq
          %v551 = vshrl.u32 %v550, 7
          %v552 = vsub.s32 0, %v551
          %v553 = vrot.slane %v548, %v552
          %v559 = vunpack.c.l.b16 %v544
          %v560 = vunpack.c.l.b16 %v545
          %v561 = vunpack.c.l.b16 %v546
          %v562 = vunpack.c.l.b16 %v547
          %v563 = vpack.c.b16 %v560, %v559
          %v564 = vpack.c.b16 %v562, %v561
          %vm567 = vcmask 261120
          %v569 = vsel %vm567, %v542, 0
          %571 = vmatprep.subr.bf16.mxu0 0
          %572 = vmatpush1.bf16.msra.mxu0 0
          %573 = vmatprep.subr.bf16.mxu0 0
          %574 = vmatpush1.bf16.msra.mxu0 0
          %575 = vmatprep.subr.bf16.mxu0 0
          %576 = vmatpush1.bf16.msra.mxu0 0
          %577 = vmatprep.subr.bf16.mxu0 0
          %578 = vmatpush1.bf16.msra.mxu0 0
          %579 = vmatprep.subr.bf16.mxu0 0
          %580 = vmatpush1.bf16.msra.mxu0 0
          %581 = vmatprep.subr.bf16.mxu0 0
          %582 = vmatpush1.bf16.msra.mxu0 0
          %583 = vmatprep.subr.bf16.mxu0 0
          %584 = vmatpush1.bf16.msra.mxu0 %v564
          %585 = vmatprep.subr.bf16.mxu0 0
          %586 = vmatpush1.bf16.msra.mxu0 %v563
          %587 = vmatprep.subr.bf16.mxu0 0
          %588 = vmatpush2.bf16.msra.mxu0 0
          %589 = vmatprep.subr.bf16.mxu0 0
          %590 = vmatpush2.bf16.msra.mxu0 0
          %591 = vmatprep.subr.bf16.mxu0 0
          %592 = vmatpush2.bf16.msra.mxu0 0
          %593 = vmatprep.subr.bf16.mxu0 0
          %594 = vmatpush2.bf16.msra.mxu0 0
          %595 = vmatprep.subr.bf16.mxu0 0
          %596 = vmatpush2.bf16.msra.mxu0 0
          %597 = vmatprep.subr.bf16.mxu0 0
          %598 = vmatpush2.bf16.msra.mxu0 0
          %599 = vmatprep.subr.bf16.mxu0 0
          %600 = vmatpush2.bf16.msra.mxu0 0
          %601 = vmatprep.subr.bf16.mxu0 0
          %602 = vmatpush2.bf16.msra.mxu0 0
          %603 = vmatprep.mubr.bf16.mxu0 0
          %604 = vmatmul.mubr.bf16.gmra.mxu0 %v569
          %v605 = vpop.f32.mrf.mxu0
          %v606 = vadd.f32 %v553, %v605
          %v607 = vpop.f32.mrf.mxu0
          %v608 = vpop.f32.mrf.mxu0
          %v609 = vpop.f32.mrf.mxu0
          %610 = vdwg.mxu0
          %v611 = vld [vmem:[#allocation13] sm:$0xf]
          %v612 = vld [vmem:[#allocation13 + $0x4] sm:$0xf]
          %v613 = vld [vmem:[#allocation13 + $0x8] sm:$0xf]
          %v614 = vld [vmem:[#allocation13 + $0xc] sm:$0xf]
          %v615 = vld [vmem:[%s9] sm:$0x1]
          %v617 = vlaneseq
          %v618 = vshrl.u32 %v617, 7
          %v619 = vsub.s32 0, %v618
          %v620 = vrot.slane %v615, %v619
          %v626 = vunpack.c.l.b16 %v611
          %v627 = vunpack.c.l.b16 %v612
          %v628 = vunpack.c.l.b16 %v613
          %v629 = vunpack.c.l.b16 %v614
          %v630 = vpack.c.b16 %v627, %v626
          %v631 = vpack.c.b16 %v629, %v628
          %v635 = vsel %vm567, %v543, 0
          %637 = vmatprep.subr.bf16.mxu0 0
          %638 = vmatpush1.bf16.msra.mxu0 0
          %639 = vmatprep.subr.bf16.mxu0 0
          %640 = vmatpush1.bf16.msra.mxu0 0
          %641 = vmatprep.subr.bf16.mxu0 0
          %642 = vmatpush1.bf16.msra.mxu0 0
          %643 = vmatprep.subr.bf16.mxu0 0
          %644 = vmatpush1.bf16.msra.mxu0 0
          %645 = vmatprep.subr.bf16.mxu0 0
          %646 = vmatpush1.bf16.msra.mxu0 0
          %647 = vmatprep.subr.bf16.mxu0 0
          %648 = vmatpush1.bf16.msra.mxu0 0
          %649 = vmatprep.subr.bf16.mxu0 0
          %650 = vmatpush1.bf16.msra.mxu0 %v631
          %651 = vmatprep.subr.bf16.mxu0 0
          %652 = vmatpush1.bf16.msra.mxu0 %v630
          %653 = vmatprep.subr.bf16.mxu0 0
          %654 = vmatpush2.bf16.msra.mxu0 0
          %655 = vmatprep.subr.bf16.mxu0 0
          %656 = vmatpush2.bf16.msra.mxu0 0
          %657 = vmatprep.subr.bf16.mxu0 0
          %658 = vmatpush2.bf16.msra.mxu0 0
          %659 = vmatprep.subr.bf16.mxu0 0
          %660 = vmatpush2.bf16.msra.mxu0 0
          %661 = vmatprep.subr.bf16.mxu0 0
          %662 = vmatpush2.bf16.msra.mxu0 0
          %663 = vmatprep.subr.bf16.mxu0 0
          %664 = vmatpush2.bf16.msra.mxu0 0
          %665 = vmatprep.subr.bf16.mxu0 0
          %666 = vmatpush2.bf16.msra.mxu0 0
          %667 = vmatprep.subr.bf16.mxu0 0
          %668 = vmatpush2.bf16.msra.mxu0 0
          %669 = vmatprep.mubr.bf16.mxu0 0
          %670 = vmatmul.mubr.bf16.gmra.mxu0 %v635
          %v671 = vpop.f32.mrf.mxu0
          %v672 = vadd.f32 %v620, %v671
          %v673 = vpop.f32.mrf.mxu0
          %v674 = vpop.f32.mrf.mxu0
          %v675 = vpop.f32.mrf.mxu0
          %676 = vdwg.mxu0
          %v677 = vpack.c.bf16 %v606, %v606
          %678 = vst [vmem:[#allocation2] sm:$0xf] %v677
          %v679 = vpack.c.bf16 %v672, %v672
          %680 = vst [vmem:[#allocation3] sm:$0xf] %v679
        $region88: #{tpu_custom_call.1} parent=59 // pred_fallthru
          _
        %v681 = vld [vmem:[%s444] sm:$0xf]
        %v682 = vld [vmem:[#allocation10] sm:$0xf]
        %v683 = vld [vmem:[#allocation10 + $0x4] sm:$0xf]
        %v684 = vld [vmem:[#allocation10 + $0x8] sm:$0xf]
        %v685 = vld [vmem:[#allocation10 + $0xc] sm:$0xf]
        %v686 = vld [vmem:[%s5] sm:$0x1]
        %v688 = vlaneseq
        %v689 = vshrl.u32 %v688, 7
        %v690 = vsub.s32 0, %v689
        %v691 = vrot.slane %v686, %v690
        %v697 = vunpack.c.l.b16 %v682
        %v698 = vunpack.c.l.b16 %v683
        %v699 = vunpack.c.l.b16 %v684
        %v700 = vunpack.c.l.b16 %v685
        %v701 = vpack.c.b16 %v698, %v697
        %v702 = vpack.c.b16 %v700, %v699
        %vm705 = vcmask 261120
        %v707 = vsel %vm705, %v681, 0
        %709 = vmatprep.subr.bf16.mxu0 0
        %710 = vmatpush1.bf16.msra.mxu0 0
        %711 = vmatprep.subr.bf16.mxu0 0
        %712 = vmatpush1.bf16.msra.mxu0 0
        %713 = vmatprep.subr.bf16.mxu0 0
        %714 = vmatpush1.bf16.msra.mxu0 0
        %715 = vmatprep.subr.bf16.mxu0 0
        %716 = vmatpush1.bf16.msra.mxu0 0
        %717 = vmatprep.subr.bf16.mxu0 0
        %718 = vmatpush1.bf16.msra.mxu0 0
        %719 = vmatprep.subr.bf16.mxu0 0
        %720 = vmatpush1.bf16.msra.mxu0 0
        %721 = vmatprep.subr.bf16.mxu0 0
        %722 = vmatpush1.bf16.msra.mxu0 %v702
        %723 = vmatprep.subr.bf16.mxu0 0
        %724 = vmatpush1.bf16.msra.mxu0 %v701
        %725 = vmatprep.subr.bf16.mxu0 0
        %726 = vmatpush2.bf16.msra.mxu0 0
        %727 = vmatprep.subr.bf16.mxu0 0
        %728 = vmatpush2.bf16.msra.mxu0 0
        %729 = vmatprep.subr.bf16.mxu0 0
        %730 = vmatpush2.bf16.msra.mxu0 0
        %731 = vmatprep.subr.bf16.mxu0 0
        %732 = vmatpush2.bf16.msra.mxu0 0
        %733 = vmatprep.subr.bf16.mxu0 0
        %734 = vmatpush2.bf16.msra.mxu0 0
        %735 = vmatprep.subr.bf16.mxu0 0
        %736 = vmatpush2.bf16.msra.mxu0 0
        %737 = vmatprep.subr.bf16.mxu0 0
        %738 = vmatpush2.bf16.msra.mxu0 0
        %739 = vmatprep.subr.bf16.mxu0 0
        %740 = vmatpush2.bf16.msra.mxu0 0
        %741 = vmatprep.mubr.bf16.mxu0 0
        %742 = vmatmul.mubr.bf16.gmra.mxu0 %v707
        %v743 = vpop.f32.mrf.mxu0
        %v744 = vadd.f32 %v691, %v743
        %v745 = vpop.f32.mrf.mxu0
        %v746 = vpop.f32.mrf.mxu0
        %v747 = vpop.f32.mrf.mxu0
        %748 = vdwg.mxu0
        %v749 = vpack.c.bf16 %v744, %v744
        %v750 = vld [vmem:[#allocation2] sm:$0xf]
        %751 = vmatprep.subr.bf16.mxu0 0
        %752 = vmatpush1.bf16.xpose.msra.mxu0 0
        %753 = vmatprep.subr.bf16.mxu0 0
        %754 = vmatpush1.bf16.xpose.msra.mxu0 0
        %755 = vmatprep.subr.bf16.mxu0 0
        %756 = vmatpush1.bf16.xpose.msra.mxu0 0
        %757 = vmatprep.subr.bf16.mxu0 0
        %758 = vmatpush1.bf16.xpose.msra.mxu0 0
        %759 = vmatprep.subr.bf16.mxu0 0
        %760 = vmatpush1.bf16.xpose.msra.mxu0 0
        %761 = vmatprep.subr.bf16.mxu0 0
        %762 = vmatpush1.bf16.xpose.msra.mxu0 0
        %763 = vmatprep.subr.bf16.mxu0 0
        %764 = vmatpush1.bf16.xpose.msra.mxu0 0
        %765 = vmatprep.subr.bf16.mxu0 0
        %766 = vmatpush1.bf16.xpose.msra.mxu0 %v750
        %767 = vmatprep.subr.bf16.mxu0 0
        %768 = vmatpush2.bf16.xpose.msra.mxu0 0
        %769 = vmatprep.subr.bf16.mxu0 0
        %770 = vmatpush2.bf16.xpose.msra.mxu0 0
        %771 = vmatprep.subr.bf16.mxu0 0
        %772 = vmatpush2.bf16.xpose.msra.mxu0 0
        %773 = vmatprep.subr.bf16.mxu0 0
        %774 = vmatpush2.bf16.xpose.msra.mxu0 0
        %775 = vmatprep.subr.bf16.mxu0 0
        %776 = vmatpush2.bf16.xpose.msra.mxu0 0
        %777 = vmatprep.subr.bf16.mxu0 0
        %778 = vmatpush2.bf16.xpose.msra.mxu0 0
        %779 = vmatprep.subr.bf16.mxu0 0
        %780 = vmatpush2.bf16.xpose.msra.mxu0 0
        %781 = vmatprep.subr.bf16.mxu0 0
        %782 = vmatpush2.bf16.xpose.msra.mxu0 0
        %783 = vmatprep.mubr.bf16.mxu0 0
        %784 = vmatmul.mubr.bf16.gmra.mxu0 %v749
        %v785 = vpop.f32.mrf.mxu0
        %v786 = vadd.f32 0.0, %v785
        %v787 = vpop.f32.mrf.mxu0
        %v788 = vpop.f32.mrf.mxu0
        %v789 = vpop.f32.mrf.mxu0
        %790 = vdwg.mxu0
        %v791 = vld [vmem:[%s534] sm:$0x3]
        %vm792 = vnez %v791
        %v793 = vsel %vm792, 16843009, 0
        %v794 = vunpack.c.0.s8 %v793
        %vm795 = vcmp.ne.s32.totalorder %v794, 0
        %v796 = vsel %vm795, %v786, -1e+09
        %vm797 = vcmask 64512
        %v798 = vsel %vm797, %v796, -inf
        %799 = vmax.xlane.f32.xlu0 %v798
        %v800 = vpop.xlane.xlu0 %799
        %v801 = vsub.f32 %v796, %v800
        %v802 = vmul.f32 %v801, 1.442695
        %v803 = vpow.pop %v802
        %v804 = vsel %vm797, %v803, 0.0
        %805 = vadd.xlane.f32.xlu0 %v804
        %v806 = vpop.xlane.xlu0 %805
        %v807 = vrcp.pop %v806
        %v808 = vmul.f32 %v803, %v807
        %v809 = vpack.c.bf16 %v808, %v808
        %v810 = vld [vmem:[#allocation3] sm:$0xf]
        %v812 = vsel %vm797, %v809, 0
        %vm814 = vcmask 1043456
        %v816 = vsel %vm814, %v810, 0
        %818 = vmatprep.subr.bf16.mxu0 0
        %819 = vmatpush1.bf16.msra.mxu0 0
        %820 = vmatprep.subr.bf16.mxu0 0
        %821 = vmatpush1.bf16.msra.mxu0 0
        %822 = vmatprep.subr.bf16.mxu0 0
        %823 = vmatpush1.bf16.msra.mxu0 0
        %824 = vmatprep.subr.bf16.mxu0 0
        %825 = vmatpush1.bf16.msra.mxu0 0
        %826 = vmatprep.subr.bf16.mxu0 0
        %827 = vmatpush1.bf16.msra.mxu0 0
        %828 = vmatprep.subr.bf16.mxu0 0
        %829 = vmatpush1.bf16.msra.mxu0 0
        %830 = vmatprep.subr.bf16.mxu0 0
        %831 = vmatpush1.bf16.msra.mxu0 0
        %832 = vmatprep.subr.bf16.mxu0 0
        %833 = vmatpush1.bf16.msra.mxu0 %v816
        %834 = vmatprep.subr.bf16.mxu0 0
        %835 = vmatpush2.bf16.msra.mxu0 0
        %836 = vmatprep.subr.bf16.mxu0 0
        %837 = vmatpush2.bf16.msra.mxu0 0
        %838 = vmatprep.subr.bf16.mxu0 0
        %839 = vmatpush2.bf16.msra.mxu0 0
        %840 = vmatprep.subr.bf16.mxu0 0
        %841 = vmatpush2.bf16.msra.mxu0 0
        %842 = vmatprep.subr.bf16.mxu0 0
        %843 = vmatpush2.bf16.msra.mxu0 0
        %844 = vmatprep.subr.bf16.mxu0 0
        %845 = vmatpush2.bf16.msra.mxu0 0
        %846 = vmatprep.subr.bf16.mxu0 0
        %847 = vmatpush2.bf16.msra.mxu0 0
        %848 = vmatprep.subr.bf16.mxu0 0
        %849 = vmatpush2.bf16.msra.mxu0 0
        %850 = vmatprep.mubr.bf16.mxu0 0
        %851 = vmatmul.mubr.bf16.gmra.mxu0 %v812
        %v852 = vpop.f32.mrf.mxu0
        %v853 = vadd.f32 0.0, %v852
        %v854 = vpop.f32.mrf.mxu0
        %v855 = vpop.f32.mrf.mxu0
        %v856 = vpop.f32.mrf.mxu0
        %857 = vdwg.mxu0
        %858 = vst [vmem:[%s527] sm:$0xff] %v853
        %s859 = sand.u32 %s288, 1
        %s860 = scalar_lea.sflag [#allocation6], %s859
        %s861 = sand.u32 %s288, 1
        %s862 = smul.addr %s861, 8
        %s863 = scalar_lea.vmem [#allocation15], %s862
        // Predicated region
        $region89: #{tpu_custom_call.1} parent=59 // pred_check
          %p864 = pneg %p298
        $region90: #{tpu_custom_call.1} parent=59 // pred_check_branch
          %866 = sbr.rel (%p864) target = $region92
        $region91: #{tpu_custom_call.1} parent=59 // pred_region
          %s868 = ssub.s32 128, 128
          %869 = vsyncadd %s860, %s868
          %s870 = sadd.s32 %s37, %s36
          %s871 = smul.addr %s870, 128
          %s872 = scalar_lea.hbm %s10, %s871
          %s874 = sshll.u32 %s863, 4
          %s875 = int_to_ptr.vmem [resolvable:$true] %s874
          %877 = dma.vmem_to_hbm [thread:$0]  %s875, 128, %s872, %s860
        $region92: #{tpu_custom_call.1} parent=59 // pred_fallthru
          _
      $region60: #{tpu_custom_call.1} parent=5 // pred_fallthru
        _
      %p878 = scmp.le.s32.totalorder 2, %s27
      // Predicated region
      $region93: #{tpu_custom_call.1} parent=5 // pred_check
        %p879 = pneg %p878
      $region94: #{tpu_custom_call.1} parent=5 // pred_check_branch
        %881 = sbr.rel (%p879) target = $region96
      $region95: #{tpu_custom_call.1} parent=5 // pred_region
        %s882 = ssub.s32 %s27, 2
        // Predicated region
        $region97: #{tpu_custom_call.1} parent=95 // pred_check
          %p883 = pneg %p304
        $region98: #{tpu_custom_call.1} parent=95 // pred_check_branch
          %885 = sbr.rel (%p883) target = $region100
        $region99: #{tpu_custom_call.1} parent=95 // pred_region
          %s886 = sand.u32 %s289, 1
          %s887 = scalar_lea.sflag [#allocation6], %s886
          %s888 = sand.u32 %s289, 1
          %s889 = smul.addr %s888, 8
          %s890 = scalar_lea.vmem [#allocation15], %s889
          %891 = dma.done %s887, 128
        $region100: #{tpu_custom_call.1} parent=95 // pred_fallthru
          _
      $region96: #{tpu_custom_call.1} parent=5 // pred_fallthru
        _
    $region6: #{tpu_custom_call.1} parent=1 // loop_footer
      %s31 = sadd.s32 1, %s27
    $region7: #{tpu_custom_call.1} parent=1 // loop_footer_branch
      %26 = sbr.rel target = $region3
    $region8: #{tpu_custom_call.1} parent=1 // loop_exit
      _
    %892 = vsyncpa [#allocation5], 1
    %s893 = scalar_lea.sflag [#allocation5], 1
    %894 = vsyncpa %s893, 1
    %895 = vsyncpa [#allocation8], 1
    %s896 = scalar_lea.sflag [#allocation8], 1
    %897 = vsyncpa %s896, 1
    %898 = vsyncpa [#allocation11], 1
    %899 = vsyncpa [#allocation14], 1
    %900 = vsyncpa [#allocation6], 1
    %s901 = scalar_lea.sflag [#allocation6], 1
    %902 = vsyncpa %s901, 1

</llo_original>
